<compile_context>
chip_gen: v6e
topology: v6e:2x2x1
jax: 0.10.0
libtpu: 0.0.40
codegen_flags: <defaults>
</compile_context>

<pallas_src>
import functools

import jax
import jax.numpy as jnp
from jax.experimental import pallas as pl
from jax.experimental.pallas import tpu as pltpu


def _linear_permute_kernel(x_ref, w_ref, b_ref, o_ref, *, S, Fin, Fout):
    # x_ref: (B, S*Fin)   VMEM, one vreg tile
    # w_ref: (Fout*Fin,)  SMEM scalars (f32)
    # b_ref: (Fout,)      SMEM scalars (f32)
    # o_ref: (B, Fout*S)  VMEM, one vreg tile; column c = o*S + s
    x = x_ref[...].astype(jnp.float32)          # single tile load

    cols = []
    for o in range(Fout):
        for s in range(S):
            # out[:, o*S + s] = b[o] + sum_f w[o, f] * x[:, s*Fin + f]
            acc = x[:, s * Fin:s * Fin + 1] * w_ref[o * Fin + 0]
            for f in range(1, Fin):
                acc = acc + x[:, s * Fin + f:s * Fin + f + 1] * w_ref[o * Fin + f]
            cols.append(acc + b_ref[o])

    # Lane-axis assembly within one vreg tile, single full-tile store.
    o_ref[...] = jnp.concatenate(cols, axis=-1).astype(o_ref.dtype)


def linear_permute(x1, weight, bias):
    """Returns permute(F.linear(x1, weight, bias), (0, 2, 1)) -> (B, Fout, S)."""
    B, S, Fin = x1.shape
    Fout = weight.shape[0]

    # Free row-major views: lane-dense 2D in, lane-dense 2D out.
    x2d = x1.reshape(B, S * Fin)
    w1d = weight.astype(jnp.float32).reshape(Fout * Fin)
    b1d = bias.astype(jnp.float32)

    out2d = pl.pallas_call(
        functools.partial(_linear_permute_kernel, S=S, Fin=Fin, Fout=Fout),
        out_shape=jax.ShapeDtypeStruct((B, Fout * S), x1.dtype),
        in_specs=[
            pl.BlockSpec(memory_space=pltpu.MemorySpace.VMEM),  # x (one tile)
            pl.BlockSpec(memory_space=pltpu.MemorySpace.SMEM),  # weight scalars
            pl.BlockSpec(memory_space=pltpu.MemorySpace.SMEM),  # bias scalars
        ],
        out_specs=pl.BlockSpec(memory_space=pltpu.MemorySpace.VMEM),
    )(x2d, w1d, b1d)

    # Column c = o*S + s  ->  row-major reshape gives (B, Fout, S) directly.
    return out2d.reshape(B, Fout, S)


@jax.jit
def model_forward(x1, weight, bias):
    # NOTE: at this size (~48 FLOPs) a plain jnp einsum+transpose would avoid
    # the pallas_call fixed cost entirely; the kernel exists so it can be fused
    # into a neighboring Pallas op / scaled up per the TODO above.
    return linear_permute(x1, weight, bias)


if __name__ == "__main__":
    key = jax.random.PRNGKey(0)
    kx, kw, kb = jax.random.split(key, 3)

    # x1 = torch.randn(6, 2, 2)
    x1 = jax.random.normal(kx, (6, 2, 2), dtype=jnp.float32)

    # torch.nn.Linear(2, 2): weight (2, 2), bias (2,), U(-1/sqrt(fan_in), ..)
    fan_in = 2
    bound = 1.0 / (fan_in ** 0.5)
    weight = jax.random.uniform(kw, (2, 2), jnp.float32, -bound, bound)
    bias = jax.random.uniform(kb, (2,), jnp.float32, -bound, bound)

    out = model_forward(x1, weight, bias)
    out = jax.block_until_ready(out)

    # Pure-JAX reference of the same semantics.
    ref = jnp.transpose(jnp.einsum("bsf,of->bso", x1, weight) + bias, (0, 2, 1))
    assert out.shape == (6, 2, 2), out.shape
    assert out.dtype == x1.dtype, out.dtype
    assert jnp.allclose(out, ref, atol=1e-5, rtol=1e-5)

    print("KERNEL_OK")
</pallas_src>

<mosaic_0001>
module attributes {stable_mosaic.version = 11 : i64} {
  func.func @_linear_permute_kernel(%arg0: memref<6x4xf32, #tpu.memory_space<vmem>>, %arg1: memref<4xf32, #tpu.memory_space<smem>>, %arg2: memref<2xf32, #tpu.memory_space<smem>>, %arg3: memref<6x4xf32, #tpu.memory_space<vmem>>) attributes {dimension_semantics = [], scalar_prefetch = 0 : i64, scratch_operands = 0 : i64, tpu.core_type = #tpu.core_type<tc>} {
    %c0 = arith.constant 0 : index
    %c0_0 = arith.constant 0 : index
    %0 = vector.load %arg0[%c0, %c0_0] : memref<6x4xf32, #tpu.memory_space<vmem>>, vector<6x4xf32>
    %1 = vector.extract_strided_slice %0 {offsets = [0, 0], sizes = [6, 1], strides = [1, 1]} : vector<6x4xf32> to vector<6x1xf32>
    %c0_1 = arith.constant 0 : index
    %2 = memref.load %arg1[%c0_1] : memref<4xf32, #tpu.memory_space<smem>>
    %3 = vector.broadcast %2 : f32 to vector<6x1xf32>
    %4 = arith.mulf %1, %3 : vector<6x1xf32>
    %5 = vector.extract_strided_slice %0 {offsets = [0, 1], sizes = [6, 1], strides = [1, 1]} : vector<6x4xf32> to vector<6x1xf32>
    %c1 = arith.constant 1 : index
    %6 = memref.load %arg1[%c1] : memref<4xf32, #tpu.memory_space<smem>>
    %7 = vector.broadcast %6 : f32 to vector<6x1xf32>
    %8 = arith.mulf %5, %7 : vector<6x1xf32>
    %9 = arith.addf %4, %8 : vector<6x1xf32>
    %c0_2 = arith.constant 0 : index
    %10 = memref.load %arg2[%c0_2] : memref<2xf32, #tpu.memory_space<smem>>
    %11 = vector.broadcast %10 : f32 to vector<6x1xf32>
    %12 = arith.addf %9, %11 : vector<6x1xf32>
    %13 = vector.extract_strided_slice %0 {offsets = [0, 2], sizes = [6, 1], strides = [1, 1]} : vector<6x4xf32> to vector<6x1xf32>
    %c0_3 = arith.constant 0 : index
    %14 = memref.load %arg1[%c0_3] : memref<4xf32, #tpu.memory_space<smem>>
    %15 = vector.broadcast %14 : f32 to vector<6x1xf32>
    %16 = arith.mulf %13, %15 : vector<6x1xf32>
    %17 = vector.extract_strided_slice %0 {offsets = [0, 3], sizes = [6, 1], strides = [1, 1]} : vector<6x4xf32> to vector<6x1xf32>
    %c1_4 = arith.constant 1 : index
    %18 = memref.load %arg1[%c1_4] : memref<4xf32, #tpu.memory_space<smem>>
    %19 = vector.broadcast %18 : f32 to vector<6x1xf32>
    %20 = arith.mulf %17, %19 : vector<6x1xf32>
    %21 = arith.addf %16, %20 : vector<6x1xf32>
    %c0_5 = arith.constant 0 : index
    %22 = memref.load %arg2[%c0_5] : memref<2xf32, #tpu.memory_space<smem>>
    %23 = vector.broadcast %22 : f32 to vector<6x1xf32>
    %24 = arith.addf %21, %23 : vector<6x1xf32>
    %25 = vector.extract_strided_slice %0 {offsets = [0, 0], sizes = [6, 1], strides = [1, 1]} : vector<6x4xf32> to vector<6x1xf32>
    %c2 = arith.constant 2 : index
    %26 = memref.load %arg1[%c2] : memref<4xf32, #tpu.memory_space<smem>>
    %27 = vector.broadcast %26 : f32 to vector<6x1xf32>
    %28 = arith.mulf %25, %27 : vector<6x1xf32>
    %29 = vector.extract_strided_slice %0 {offsets = [0, 1], sizes = [6, 1], strides = [1, 1]} : vector<6x4xf32> to vector<6x1xf32>
    %c3 = arith.constant 3 : index
    %30 = memref.load %arg1[%c3] : memref<4xf32, #tpu.memory_space<smem>>
    %31 = vector.broadcast %30 : f32 to vector<6x1xf32>
    %32 = arith.mulf %29, %31 : vector<6x1xf32>
    %33 = arith.addf %28, %32 : vector<6x1xf32>
    %c1_6 = arith.constant 1 : index
    %34 = memref.load %arg2[%c1_6] : memref<2xf32, #tpu.memory_space<smem>>
    %35 = vector.broadcast %34 : f32 to vector<6x1xf32>
    %36 = arith.addf %33, %35 : vector<6x1xf32>
    %37 = vector.extract_strided_slice %0 {offsets = [0, 2], sizes = [6, 1], strides = [1, 1]} : vector<6x4xf32> to vector<6x1xf32>
    %c2_7 = arith.constant 2 : index
    %38 = memref.load %arg1[%c2_7] : memref<4xf32, #tpu.memory_space<smem>>
    %39 = vector.broadcast %38 : f32 to vector<6x1xf32>
    %40 = arith.mulf %37, %39 : vector<6x1xf32>
    %41 = vector.extract_strided_slice %0 {offsets = [0, 3], sizes = [6, 1], strides = [1, 1]} : vector<6x4xf32> to vector<6x1xf32>
    %c3_8 = arith.constant 3 : index
    %42 = memref.load %arg1[%c3_8] : memref<4xf32, #tpu.memory_space<smem>>
    %43 = vector.broadcast %42 : f32 to vector<6x1xf32>
    %44 = arith.mulf %41, %43 : vector<6x1xf32>
    %45 = arith.addf %40, %44 : vector<6x1xf32>
    %c1_9 = arith.constant 1 : index
    %46 = memref.load %arg2[%c1_9] : memref<2xf32, #tpu.memory_space<smem>>
    %47 = vector.broadcast %46 : f32 to vector<6x1xf32>
    %48 = arith.addf %45, %47 : vector<6x1xf32>
    %49 = tpu.concatenate %12, %24, %36, %48 in 1 : vector<6x1xf32>, vector<6x1xf32>, vector<6x1xf32>, vector<6x1xf32> -> vector<6x4xf32>
    %c0_10 = arith.constant 0 : index
    %c0_11 = arith.constant 0 : index
    %50 = vector.load %arg3[%c0_10, %c0_11] : memref<6x4xf32, #tpu.memory_space<vmem>>, vector<6x4xf32>
    tpu.vector_store %arg3[%c0_10, %c0_11], %49 {strides = array<i32>} : memref<6x4xf32, #tpu.memory_space<vmem>>, vector<6x4xf32>,
    return
  }
}

</mosaic_0001>

<llo_original>
// kernel: model_forward.1
$region0: #{model_forward.1}
  #allocation0 [shape = 'u32[]', space=smem, size = 0x4, offset = 0x4, fixed_abs, tag = 'smem constant byte address 0x4 - core index']
  #allocation1 [shape = 'u32[144,128]{1,0:T(1,128)}', space=vmem, size = 0x12000, scoped, tag = 'internal scratch']
  %s0 = inlined_call_operand.vmem [shape: f32[6,4], index: 0, kind: input, shape index: {}]
  %s1 = inlined_call_operand.vmem [shape: f32[4], index: 1, kind: input, shape index: {}]
  %s2 = inlined_call_operand.vmem [shape: f32[2], index: 2, kind: input, shape index: {}]
  %s3 = inlined_call_operand.vmem [shape: f32[6,4], index: 3, kind: output, shape index: {}]
  %s4 = sld [smem:[#allocation0]]
  $region30: #{model_forward.1} parent=0
    _
  %s6 = ssub.s32 1, %s4
  %s7 = scalar_select 0, %s6, %s4
  $region1: #{model_forward.1} parent=0
    #allocation2 [shape = 'u8[512]{0}', space=smem, size = 0x200, scoped, tag = 'input window, operand 1, single buffered']
    #allocation3 [shape = 's32[1]{0}', space=sflag, size = 0x4, scoped, tag = 'scoped memory for model_forward.1']
    #allocation4 [shape = 'u8[512]{0}', space=smem, size = 0x200, scoped, tag = 'input window, operand 2, single buffered']
    #allocation5 [shape = 's32[1]{0}', space=sflag, size = 0x4, scoped, tag = 'scoped memory for model_forward.1']
    %8 = vsyncpa [#allocation3], 0
    %9 = vsyncpa [#allocation5], 0
    // Predicated region
    $region2: #{model_forward.1} parent=1 // pred_check
      _
    $region3: #{model_forward.1} parent=1 // pred_check_branch
      %11 = sbr.rel (0) target = $region5
    $region4: #{model_forward.1} parent=1 // pred_region
      _
    $region5: #{model_forward.1} parent=1 // pred_fallthru
      _
    // Predicated region
    $region6: #{model_forward.1} parent=1 // pred_check
      _
    $region7: #{model_forward.1} parent=1 // pred_check_branch
      %13 = sbr.rel (0) target = $region9
    $region8: #{model_forward.1} parent=1 // pred_region
      %s15 = ssub.s32 16, 16
      %16 = vsyncadd [#allocation3], %s15
      %s18 = sshll.u32 %s1, 4
      %s19 = int_to_ptr.vmem [resolvable:$true] %s18
      %21 = dma.vmem_to_smem %s19, 16, [#allocation2], [#allocation3]
    $region9: #{model_forward.1} parent=1 // pred_fallthru
      _
    // Predicated region
    $region10: #{model_forward.1} parent=1 // pred_check
      _
    $region11: #{model_forward.1} parent=1 // pred_check_branch
      %23 = sbr.rel (0) target = $region13
    $region12: #{model_forward.1} parent=1 // pred_region
      %s25 = ssub.s32 16, 16
      %26 = vsyncadd [#allocation5], %s25
      %s28 = sshll.u32 %s2, 4
      %s29 = int_to_ptr.vmem [resolvable:$true] %s28
      %31 = dma.vmem_to_smem %s29, 16, [#allocation4], [#allocation5]
    $region13: #{model_forward.1} parent=1 // pred_fallthru
      _
    // Predicated region
    $region14: #{model_forward.1} parent=1 // pred_check
      _
    $region15: #{model_forward.1} parent=1 // pred_check_branch
      %33 = sbr.rel (0) target = $region17
    $region16: #{model_forward.1} parent=1 // pred_region
      %34 = dma.done [#allocation3], 16
    $region17: #{model_forward.1} parent=1 // pred_fallthru
      _
    // Predicated region
    $region18: #{model_forward.1} parent=1 // pred_check
      _
    $region19: #{model_forward.1} parent=1 // pred_check_branch
      %36 = sbr.rel (0) target = $region21
    $region20: #{model_forward.1} parent=1 // pred_region
      %37 = dma.done [#allocation5], 16
    $region21: #{model_forward.1} parent=1 // pred_fallthru
      _
    %38 = sfence
    %v39 = vld [vmem:[%s0] sm:$0x3f]
    %s40 = sld [smem:[#allocation2]]
    %v41 = vstv %s40
    %v42 = vmul.f32 %v39, %v41
    %s43 = sld [smem:[#allocation2 + $0x1]]
    %v44 = vstv %s43
    %v45 = vmul.f32 %v39, %v44
    %47 = vrot.lane.b32.xlu0 %v45, 127
    %v48 = vpop.permute.xlu0 %47
    %v50 = vadd.f32 %v42, %v48
    %s51 = sld [smem:[#allocation4]]
    %v52 = vstv %s51
    %v53 = vadd.f32 %v50, %v52
    %s54 = sld [smem:[#allocation2 + $0x2]]
    %v55 = vstv %s54
    %v56 = vmul.f32 %v39, %v55
    %s57 = sld [smem:[#allocation2 + $0x3]]
    %v58 = vstv %s57
    %v59 = vmul.f32 %v39, %v58
    %61 = vrot.lane.b32.xlu0 %v59, 127
    %v62 = vpop.permute.xlu0 %61
    %v64 = vadd.f32 %v56, %v62
    %s65 = sld [smem:[#allocation4 + $0x1]]
    %v66 = vstv %s65
    %v67 = vadd.f32 %v64, %v66
    %69 = vrot.lane.b32.xlu0 %v53, 127
    %v70 = vpop.permute.xlu0 %69
    %73 = vrot.lane.b32.xlu0 %v67, 2
    %v74 = vpop.permute.xlu0 %73
    %76 = vrot.lane.b32.xlu0 %v67, 1
    %v77 = vpop.permute.xlu0 %76
    %vm79 = vcmask 7168
    %v80 = vsel %vm79, %v53, %v70
    %vm81 = vcmask 15360
    %v82 = vsel %vm81, %v80, %v74
    %vm83 = vcmask 23552
    %v84 = vsel %vm83, %v82, %v77
    %vm85 = vcmask 29696
    %86 = vst.msk [vmem:[%s3] sm:$0x3f] %vm85, %v84
    // Predicated region
    $region22: #{model_forward.1} parent=1 // pred_check
      _
    $region23: #{model_forward.1} parent=1 // pred_check_branch
      %88 = sbr.rel (0) target = $region25
    $region24: #{model_forward.1} parent=1 // pred_region
      _
    $region25: #{model_forward.1} parent=1 // pred_fallthru
      _
    // Predicated region
    $region26: #{model_forward.1} parent=1 // pred_check
      _
    $region27: #{model_forward.1} parent=1 // pred_check_branch
      %90 = sbr.rel (0) target = $region29
    $region28: #{model_forward.1} parent=1 // pred_region
      _
    $region29: #{model_forward.1} parent=1 // pred_fallthru
      _
    %91 = vsyncpa [#allocation3], 1
    %92 = vsyncpa [#allocation5], 1

</llo_original>
